<compile_context>
chip_gen: v6e
topology: v6e:2x2x1
jax: 0.10.0
libtpu: 0.0.40
codegen_flags: <defaults>
</compile_context>

<pallas_src>
import jax
import jax.numpy as jnp
from jax.experimental import pallas as pl
from jax.experimental.pallas import tpu as pltpu


# ----------------------------------------------------------------------------- helpers
def _pick_tile(dim: int, unit: int, cap: int) -> int:
    """Largest divisor of `dim` that is a multiple of `unit` and <= cap.

    Falls back to the full extent (always legal for a BlockSpec dim) when no
    such divisor exists (e.g. dim < unit or dim not divisible by unit).
    """
    d = (min(dim, cap) // unit) * unit
    while d >= unit:
        if dim % d == 0:
            return d
        d -= unit
    return dim


# ----------------------------------------------------------------------------- fused path
def _fused_kernel(x_ref, w_ref, b_ref, o_ref):
    # x_ref: (1, C, HW)   w_ref: (C, C)   b_ref: (C, 1)   o_ref: (1, C, HW)
    xb = x_ref[0]                                          # (C, HW), native dtype
    hw = xb.shape[-1]

    # Global average pool on the MXU: (C, HW) @ (HW, 1) with f32 accumulation.
    ones = jnp.ones((hw, 1), dtype=xb.dtype)
    pooled = jnp.dot(xb, ones, preferred_element_type=jnp.float32) * (1.0 / hw)  # (C, 1) f32

    # 1x1 conv == dense C->C matvec on the MXU, f32 throughout.
    fc = (jnp.dot(w_ref[...].astype(jnp.float32), pooled,
                  preferred_element_type=jnp.float32)
          + b_ref[...].astype(jnp.float32))                # (C, 1) f32
    attn = jax.nn.sigmoid(fc)                              # (C, 1) f32

    # Broadcast multiply in the input dtype (cast only the tiny attn vector).
    o_ref[0] = xb * attn.astype(xb.dtype)


def _channel_attention_fused(x_nchw, weight, bias):
    B, C, H, W = x_nchw.shape
    HW = H * W
    x = x_nchw.reshape(B, C, HW)

    out = pl.pallas_call(
        _fused_kernel,
        out_shape=jax.ShapeDtypeStruct((B, C, HW), x.dtype),
        grid_spec=pltpu.PrefetchScalarGridSpec(
            num_scalar_prefetch=0,
            grid=(B,),
            in_specs=[
                pl.BlockSpec((1, C, HW), lambda b: (b, 0, 0)),  # one sample / step
                pl.BlockSpec((C, C), lambda b: (0, 0)),         # resident weight
                pl.BlockSpec((C, 1), lambda b: (0, 0)),         # resident bias
            ],
            out_specs=pl.BlockSpec((1, C, HW), lambda b: (b, 0, 0)),
        ),
        compiler_params=pltpu.CompilerParams(
            dimension_semantics=("parallel",),
            vmem_limit_bytes=32 * 1024 * 1024,
        ),
    )(x, weight, bias.reshape(C, 1))
    return out.reshape(B, C, H, W)


# ----------------------------------------------------------------------------- two-pass path
def _pool_sum_kernel(x_ref, psum_ref):
    # x_ref: (tr, thw)   psum_ref: (tr, 1) f32, resident across the hw axis.
    @pl.when(pl.program_id(1) == 0)
    def _():
        psum_ref[...] = jnp.zeros_like(psum_ref)

    xb = x_ref[...]
    ones = jnp.ones((xb.shape[-1], 1), dtype=xb.dtype)
    # Lane-axis sum on the MXU with f32 accumulation (no full-tile upcast).
    psum_ref[...] += jnp.dot(xb, ones, preferred_element_type=jnp.float32)


def _scale_kernel(attn_ref, x_ref, o_ref):
    # attn_ref: (tr, 1) f32   x_ref / o_ref: (tr, thw) native dtype
    xb = x_ref[...]
    o_ref[...] = xb * attn_ref[...].astype(xb.dtype)


def _channel_attention_two_pass(x_nchw, weight, bias):
    B, C, H, W = x_nchw.shape
    HW = H * W
    R = B * C
    x2 = x_nchw.reshape(R, HW)                      # rows = B*C -> fills sublanes

    # Row tile: multiple of 8 (sublane); lane tile: multiple of 128, >=512 when possible.
    tr = _pick_tile(R, 8, 256)
    thw = _pick_tile(HW, 128, 1024)
    grid = (R // tr, HW // thw)

    # Pass 1: per-(b,c) spatial sums, accumulated in f32 in a resident output block.
    psum = pl.pallas_call(
        _pool_sum_kernel,
        out_shape=jax.ShapeDtypeStruct((R, 1), jnp.float32),
        grid_spec=pltpu.PrefetchScalarGridSpec(
            num_scalar_prefetch=0,
            grid=grid,
            in_specs=[pl.BlockSpec((tr, thw), lambda r, h: (r, h))],
            out_specs=pl.BlockSpec((tr, 1), lambda r, h: (r, 0)),
        ),
        compiler_params=pltpu.CompilerParams(
            dimension_semantics=("parallel", "arbitrary"),  # hw axis is the reduction
            vmem_limit_bytes=32 * 1024 * 1024,
        ),
    )(x2)

    # Tiny (B,C) @ (C,C) + bias + sigmoid: stays in plain XLA (negligible work).
    pooled = psum.reshape(B, C) * (1.0 / HW)
    fc = pooled @ weight.astype(jnp.float32).T + bias.astype(jnp.float32)[None, :]
    attn = jax.nn.sigmoid(fc).reshape(R, 1)          # (B*C, 1) f32

    # Pass 2: lane-dense tiled broadcast scale in the native dtype.
    out2 = pl.pallas_call(
        _scale_kernel,
        out_shape=jax.ShapeDtypeStruct((R, HW), x2.dtype),
        grid_spec=pltpu.PrefetchScalarGridSpec(
            num_scalar_prefetch=0,
            grid=grid,
            in_specs=[
                pl.BlockSpec((tr, 1), lambda r, h: (r, 0)),
                pl.BlockSpec((tr, thw), lambda r, h: (r, h)),
            ],
            out_specs=pl.BlockSpec((tr, thw), lambda r, h: (r, h)),
        ),
        compiler_params=pltpu.CompilerParams(
            dimension_semantics=("parallel", "parallel"),
            vmem_limit_bytes=32 * 1024 * 1024,
        ),
    )(attn, x2)

    return out2.reshape(B, C, H, W)


# ----------------------------------------------------------------------------- dispatcher
def channel_attention(x_nchw, weight, bias, *, fused_vmem_budget_bytes=24 * 1024 * 1024):
    """x_nchw: (B, C, H, W); weight: (C, C) 1x1-conv weight; bias: (C,)."""
    B, C, H, W = x_nchw.shape
    HW = H * W
    x_bytes = jnp.dtype(x_nchw.dtype).itemsize
    w_bytes = jnp.dtype(weight.dtype).itemsize
    # Fused working set: 2x double-buffered input + 2x output block + weight.
    fused_vmem = 4 * C * HW * x_bytes + 2 * C * C * w_bytes
    if fused_vmem <= fused_vmem_budget_bytes:
        return _channel_attention_fused(x_nchw, weight, bias)
    return _channel_attention_two_pass(x_nchw, weight, bias)


def channel_attention_ref(x, weight, bias):
    pooled = jnp.mean(x, axis=(2, 3))                # (B, C)
    fc = pooled @ weight.T + bias[None, :]           # (B, C)
    attn = jax.nn.sigmoid(fc)[:, :, None, None]      # (B, C, 1, 1)
    return x * attn


if __name__ == "__main__":
    key = jax.random.PRNGKey(0)
    kx, kw, kb = jax.random.split(key, 3)

    B, C, H, W = 2, 4, 16, 16
    x = jax.random.normal(kx, (B, C, H, W), dtype=jnp.float32)
    weight = jax.random.normal(kw, (C, C), dtype=jnp.float32) * 0.1
    bias = jax.random.normal(kb, (C,), dtype=jnp.float32) * 0.1

    # 1) small f32 input -> fused single-kernel path
    out = jax.block_until_ready(channel_attention(x, weight, bias))
    ref = channel_attention_ref(x, weight, bias)
    assert out.shape == (B, C, H, W)
    assert jnp.allclose(out, ref, atol=1e-4, rtol=1e-4), "fused path mismatch"

    # 2) larger spatial, force the tiled two-pass path (exercises hw-axis accumulation)
    H2 = W2 = 64
    x_big = jax.random.normal(kx, (B, C, H2, W2), dtype=jnp.float32)
    out2 = jax.block_until_ready(
        channel_attention(x_big, weight, bias, fused_vmem_budget_bytes=0))
    ref2 = channel_attention_ref(x_big, weight, bias)
    assert out2.shape == (B, C, H2, W2)
    assert jnp.allclose(out2, ref2, atol=1e-4, rtol=1e-4), "two-pass path mismatch"

    # 3) bf16 input: pool / conv / sigmoid in f32, final multiply in bf16
    xb16 = x.astype(jnp.bfloat16)
    wb16 = weight.astype(jnp.bfloat16)
    bb16 = bias.astype(jnp.bfloat16)
    out3 = jax.block_until_ready(channel_attention(xb16, wb16, bb16))
    ref3 = channel_attention_ref(xb16.astype(jnp.float32),
                                 wb16.astype(jnp.float32),
                                 bb16.astype(jnp.float32))
    assert jnp.allclose(out3.astype(jnp.float32), ref3, atol=1e-1, rtol=1e-1), "bf16 mismatch"

    print("KERNEL_OK")
</pallas_src>

<mosaic_0001>
module attributes {stable_mosaic.version = 11 : i64} {
  func.func @_fused_kernel(%arg0: i32, %arg1: memref<1x4x256xf32, #tpu.memory_space<vmem>>, %arg2: memref<4x4xf32, #tpu.memory_space<vmem>>, %arg3: memref<4x1xf32, #tpu.memory_space<vmem>>, %arg4: memref<1x4x256xf32, #tpu.memory_space<vmem>>) attributes {dimension_semantics = [#tpu.dimension_semantics<parallel>], iteration_bounds = array<i64: 2>, scalar_prefetch = 0 : i64, scratch_operands = 0 : i64, tpu.core_type = #tpu.core_type<tc>, window_params = [{transform_indices = @transform_0, window_bounds = array<i64: 1, 4, 256>}, {pipeline_mode = #tpu.pipeline_mode<synchronous>, transform_indices = @transform_1, window_bounds = array<i64: 4, 4>}, {pipeline_mode = #tpu.pipeline_mode<synchronous>, transform_indices = @transform_2, window_bounds = array<i64: 4, 1>}, {transform_indices = @transform_3, window_bounds = array<i64: 1, 4, 256>}]} {
    %c0 = arith.constant 0 : index
    %c0_0 = arith.constant 0 : index
    %c0_1 = arith.constant 0 : index
    %0 = vector.load %arg1[%c0, %c0_0, %c0_1] : memref<1x4x256xf32, #tpu.memory_space<vmem>>, vector<1x4x256xf32>
    %1 = vector.shape_cast %0 : vector<1x4x256xf32> to vector<4x256xf32>
    %cst = arith.constant 1.000000e+00 : f32
    %2 = vector.broadcast %cst : f32 to vector<256x1xf32>
    %cst_2 = arith.constant dense<0.000000e+00> : vector<4x1xf32>
    %3 = tpu.matmul %1, %2, %cst_2 {dimension_numbers = #tpu.dot_dimension_numbers<[1], [0], [0], [1], [0, 0, 1, 1], [], []>} : vector<4x256xf32>, vector<256x1xf32>, vector<4x1xf32> -> vector<4x1xf32>
    %cst_3 = arith.constant 3.906250e-03 : f32
    %4 = vector.broadcast %cst_3 : f32 to vector<4x1xf32>
    %5 = arith.mulf %3, %4 : vector<4x1xf32>
    %c0_4 = arith.constant 0 : index
    %c0_5 = arith.constant 0 : index
    %6 = vector.load %arg2[%c0_4, %c0_5] : memref<4x4xf32, #tpu.memory_space<vmem>>, vector<4x4xf32>
    %cst_6 = arith.constant dense<0.000000e+00> : vector<4x1xf32>
    %7 = tpu.matmul %6, %5, %cst_6 {dimension_numbers = #tpu.dot_dimension_numbers<[1], [0], [0], [1], [0, 0, 1, 1], [], []>} : vector<4x4xf32>, vector<4x1xf32>, vector<4x1xf32> -> vector<4x1xf32>
    %c0_7 = arith.constant 0 : index
    %c0_8 = arith.constant 0 : index
    %8 = vector.load %arg3[%c0_7, %c0_8] : memref<4x1xf32, #tpu.memory_space<vmem>>, vector<4x1xf32>
    %9 = arith.addf %7, %8 : vector<4x1xf32>
    %10 = arith.negf %9 : vector<4x1xf32>
    %11 = math.exp %10 : vector<4x1xf32>
    %cst_9 = arith.constant 1.000000e+00 : f32
    %12 = vector.broadcast %cst_9 : f32 to vector<4x1xf32>
    %13 = arith.addf %12, %11 : vector<4x1xf32>
    %14 = arith.divf %12, %13 : vector<4x1xf32>
    %15 = vector.broadcast %14 : vector<4x1xf32> to vector<4x256xf32>
    %16 = arith.mulf %1, %15 : vector<4x256xf32>
    %c0_10 = arith.constant 0 : index
    %c0_11 = arith.constant 0 : index
    %c0_12 = arith.constant 0 : index
    %17 = vector.load %arg4[%c0_10, %c0_11, %c0_12] : memref<1x4x256xf32, #tpu.memory_space<vmem>>, vector<1x4x256xf32>
    %18 = vector.shape_cast %17 : vector<1x4x256xf32> to vector<4x256xf32>
    %19 = vector.shape_cast %16 : vector<4x256xf32> to vector<1x4x256xf32>
    tpu.vector_store %arg4[%c0_10, %c0_11, %c0_12], %19 {strides = array<i32>} : memref<1x4x256xf32, #tpu.memory_space<vmem>>, vector<1x4x256xf32>,
    return
  }
  func.func @transform_0(%arg0: i32) -> (i32, i32, i32) {
    %c0_i32 = arith.constant 0 : i32
    %c0_i32_0 = arith.constant 0 : i32
    %c0_i32_1 = arith.constant 0 : i32
    return %arg0, %c0_i32, %c0_i32_0 : i32, i32, i32
  }
  func.func @transform_1(%arg0: i32) -> (i32, i32) {
    %c0_i32 = arith.constant 0 : i32
    %c0_i32_0 = arith.constant 0 : i32
    %c0_i32_1 = arith.constant 0 : i32
    return %c0_i32, %c0_i32_0 : i32, i32
  }
  func.func @transform_2(%arg0: i32) -> (i32, i32) {
    %c0_i32 = arith.constant 0 : i32
    %c0_i32_0 = arith.constant 0 : i32
    %c0_i32_1 = arith.constant 0 : i32
    return %c0_i32, %c0_i32_0 : i32, i32
  }
  func.func @transform_3(%arg0: i32) -> (i32, i32, i32) {
    %c0_i32 = arith.constant 0 : i32
    %c0_i32_0 = arith.constant 0 : i32
    %c0_i32_1 = arith.constant 0 : i32
    return %arg0, %c0_i32, %c0_i32_0 : i32, i32, i32
  }
}

</mosaic_0001>

<llo_original>
// kernel: tpu_custom_call.1
$region0: #{tpu_custom_call.1}
  #allocation0 [shape = 'u32[]', space=smem, size = 0x4, offset = 0x4, fixed_abs, tag = 'smem constant byte address 0x4 - core index']
  #allocation1 [shape = 'u32[144,128]{1,0:T(1,128)}', space=vmem, size = 0x12000, scoped, tag = 'internal scratch']
  %s0 = inlined_call_operand.hbm [shape: f32[2,4,256], index: 0, kind: input, shape index: {}]
  %s1 = inlined_call_operand.vmem [shape: f32[4,4], index: 1, kind: input, shape index: {}]
  %s2 = inlined_call_operand.vmem [shape: f32[4,1], index: 2, kind: input, shape index: {}]
  %s3 = inlined_call_operand.hbm [shape: f32[2,4,256], index: 3, kind: output, shape index: {}]
  %s4 = sld [smem:[#allocation0]]
  $region49: #{tpu_custom_call.1} parent=0
    _
  %s6 = ssub.s32 1, %s4
  %s7 = scalar_select 0, %s6, %s4
  $region1: #{tpu_custom_call.1} parent=0
    #allocation2 [shape = 'u8[8192]{0}', space=vmem, size = 0x2000, scoped, tag = 'input window, operand 0']
    #allocation3 [shape = 's32[2]{0}', space=sflag, size = 0x8, scoped, tag = 'scoped memory for tpu_custom_call.1']
    #allocation4 [shape = 's32[2]{0}', space=sflag, size = 0x8, scoped, tag = 'scoped memory for tpu_custom_call.1']
    #allocation5 [shape = 'u8[8192]{0}', space=vmem, size = 0x2000, scoped, tag = 'output window, operand 0']
    %8 = vsyncpa [#allocation3], 0
    %s9 = scalar_lea.sflag [#allocation3], 1
    %10 = vsyncpa %s9, 0
    %11 = vsyncpa [#allocation4], 0
    %s12 = scalar_lea.sflag [#allocation4], 1
    %13 = vsyncpa %s12, 0
    loop: start=0, step=1, limit=4
    $region2: #{tpu_custom_call.1} parent=1 // loop_pre_header
      _
    $region3: #{tpu_custom_call.1} parent=1 // loop_header
      %s15 = sphi 0, %s19
      %p16 = scmp.ge.s32.totalorder %s15, 4
      %s25 = sphi 0, %s27
      %s28 = sphi 0, %s25
      %s29 = sphi 0, %s28
      %s45 = sphi 0, %s29
      %s49 = sphi 0, %s49
      %s51 = sphi 0, %s49
      %s52 = sphi 0, %s51
      %s66 = sphi 0, %s52
      %s70 = sphi 0, %s70
      %s72 = sphi 0, %s70
      %s73 = sphi 0, %s72
      %s87 = sphi 0, %s73
      %s93 = sphi 0, %s95
      %s96 = sphi 0, %s93
      %s97 = sphi 0, %s96
      %s113 = sphi 0, %s97
    $region4: #{tpu_custom_call.1} parent=1 // loop_header_branch
      %18 = sbr.rel (%p16) target = $region8
    $region5: #{tpu_custom_call.1} parent=1 // loop_body
      %s20 = ssub.s32 %s15, 1
      %s21 = ssub.s32 %s15, 2
      %s22 = sadd.s32 %s15, 1
      %s23 = ssub.s32 %s15, %s22
      %p24 = scmp.eq.s32.totalorder %s23, 0
      %s26 = sadd.s32 %s25, 1
      %s27 = scalar_select %p24, %s25, %s26
      %p30 = pneg %p24
      %p31 = scmp.eq.s32.totalorder %s15, 1
      %p32 = por %p30, %p31
      %p33 = scmp.ne.s32.totalorder %s25, %s28
      %p34 = scmp.eq.s32.totalorder %s15, 0
      %p35 = por %p33, %p34
      %p36 = scmp.ne.s32.totalorder %s25, %s28
      %p37 = scmp.eq.s32.totalorder %s20, 1
      %p38 = por %p36, %p37
      %p39 = scmp.ne.s32.totalorder %s28, %s29
      %p40 = scmp.eq.s32.totalorder %s20, 0
      %p41 = por %p39, %p40
      %p42 = scmp.ne.s32.totalorder %s28, %s29
      %p43 = scmp.eq.s32.totalorder %s21, 1
      %p44 = por %p42, %p43
      %p46 = scmp.ne.s32.totalorder %s29, %s45
      %p47 = scmp.eq.s32.totalorder %s21, 0
      %p48 = por %p46, %p47
      %s50 = sadd.s32 %s49, 1
      %p53 = scmp.eq.s32.totalorder %s15, 1
      %p54 = scmp.ne.s32.totalorder %s49, %s51
      %p55 = scmp.eq.s32.totalorder %s15, 0
      %p56 = por %p54, %p55
      %p57 = scmp.ne.s32.totalorder %s49, %s51
      %p58 = scmp.eq.s32.totalorder %s20, 1
      %p59 = por %p57, %p58
      %p60 = scmp.ne.s32.totalorder %s51, %s52
      %p61 = scmp.eq.s32.totalorder %s20, 0
      %p62 = por %p60, %p61
      %p63 = scmp.ne.s32.totalorder %s51, %s52
      %p64 = scmp.eq.s32.totalorder %s21, 1
      %p65 = por %p63, %p64
      %p67 = scmp.ne.s32.totalorder %s52, %s66
      %p68 = scmp.eq.s32.totalorder %s21, 0
      %p69 = por %p67, %p68
      %s71 = sadd.s32 %s70, 1
      %p74 = scmp.eq.s32.totalorder %s15, 1
      %p75 = scmp.ne.s32.totalorder %s70, %s72
      %p76 = scmp.eq.s32.totalorder %s15, 0
      %p77 = por %p75, %p76
      %p78 = scmp.ne.s32.totalorder %s70, %s72
      %p79 = scmp.eq.s32.totalorder %s20, 1
      %p80 = por %p78, %p79
      %p81 = scmp.ne.s32.totalorder %s72, %s73
      %p82 = scmp.eq.s32.totalorder %s20, 0
      %p83 = por %p81, %p82
      %p84 = scmp.ne.s32.totalorder %s72, %s73
      %p85 = scmp.eq.s32.totalorder %s21, 1
      %p86 = por %p84, %p85
      %p88 = scmp.ne.s32.totalorder %s73, %s87
      %p89 = scmp.eq.s32.totalorder %s21, 0
      %p90 = por %p88, %p89
      %s91 = ssub.s32 %s15, %s22
      %p92 = scmp.eq.s32.totalorder %s91, 0
      %s94 = sadd.s32 %s93, 1
      %s95 = scalar_select %p92, %s93, %s94
      %p98 = pneg %p92
      %p99 = scmp.eq.s32.totalorder %s15, 1
      %p100 = por %p98, %p99
      %p101 = scmp.ne.s32.totalorder %s93, %s96
      %p102 = scmp.eq.s32.totalorder %s15, 0
      %p103 = por %p101, %p102
      %p104 = scmp.ne.s32.totalorder %s93, %s96
      %p105 = scmp.eq.s32.totalorder %s20, 1
      %p106 = por %p104, %p105
      %p107 = scmp.ne.s32.totalorder %s96, %s97
      %p108 = scmp.eq.s32.totalorder %s20, 0
      %p109 = por %p107, %p108
      %p110 = scmp.ne.s32.totalorder %s96, %s97
      %p111 = scmp.eq.s32.totalorder %s21, 1
      %p112 = por %p110, %p111
      %p114 = scmp.ne.s32.totalorder %s97, %s113
      %p115 = scmp.eq.s32.totalorder %s21, 0
      %p116 = por %p114, %p115
      %p117 = scmp.le.s32.totalorder 1, %s15
      %p118 = scmp.lt.s32.totalorder %s15, 3
      %p119 = pnand %p117, %p118
      %p120 = pneg %p119
      // Predicated region
      $region9: #{tpu_custom_call.1} parent=5 // pred_check
        _
      $region10: #{tpu_custom_call.1} parent=5 // pred_check_branch
        %122 = sbr.rel (%p119) target = $region12
      $region11: #{tpu_custom_call.1} parent=5 // pred_region
        %s123 = ssub.s32 %s15, 1
        // Predicated region
        $region13: #{tpu_custom_call.1} parent=11 // pred_check
          %p124 = pneg %p62
        $region14: #{tpu_custom_call.1} parent=11 // pred_check_branch
          %126 = sbr.rel (%p124) target = $region16
        $region15: #{tpu_custom_call.1} parent=11 // pred_region
          _
        $region16: #{tpu_custom_call.1} parent=11 // pred_fallthru
          _
        // Predicated region
        $region17: #{tpu_custom_call.1} parent=11 // pred_check
          %p127 = pneg %p83
        $region18: #{tpu_custom_call.1} parent=11 // pred_check_branch
          %129 = sbr.rel (%p127) target = $region20
        $region19: #{tpu_custom_call.1} parent=11 // pred_region
          _
        $region20: #{tpu_custom_call.1} parent=11 // pred_fallthru
          _
      $region12: #{tpu_custom_call.1} parent=5 // pred_fallthru
        _
      %p130 = scmp.lt.s32.totalorder %s15, 2
      // Predicated region
      $region21: #{tpu_custom_call.1} parent=5 // pred_check
        %p131 = pneg %p130
      $region22: #{tpu_custom_call.1} parent=5 // pred_check_branch
        %133 = sbr.rel (%p131) target = $region24
      $region23: #{tpu_custom_call.1} parent=5 // pred_region
        // Predicated region
        $region25: #{tpu_custom_call.1} parent=23 // pred_check
          %p134 = pneg %p35
        $region26: #{tpu_custom_call.1} parent=23 // pred_check_branch
          %136 = sbr.rel (%p134) target = $region28
        $region27: #{tpu_custom_call.1} parent=23 // pred_region
          %s137 = sand.u32 %s25, 1
          %s138 = scalar_lea.sflag [#allocation3], %s137
          %s139 = sand.u32 %s25, 1
          %s140 = smul.addr %s139, 8
          %s141 = scalar_lea.vmem [#allocation2], %s140
          %s143 = ssub.s32 128, 128
          %144 = vsyncadd %s138, %s143
          %s145 = smul.addr %s15, 2
          %s146 = smul.addr %s145, 64
          %s147 = scalar_lea.hbm %s0, %s146
          %s149 = sshll.u32 %s141, 4
          %s150 = int_to_ptr.vmem [resolvable:$true] %s149
          %152 = dma.hbm_to_vmem [thread:$0]  %s147, 128, %s150, %s138
        $region28: #{tpu_custom_call.1} parent=23 // pred_fallthru
          _
      $region24: #{tpu_custom_call.1} parent=5 // pred_fallthru
        _
      %p153 = scmp.le.s32.totalorder 1, %s15
      %p154 = scmp.lt.s32.totalorder %s15, 3
      %p155 = pnand %p153, %p154
      %p156 = pneg %p155
      // Predicated region
      $region29: #{tpu_custom_call.1} parent=5 // pred_check
        _
      $region30: #{tpu_custom_call.1} parent=5 // pred_check_branch
        %158 = sbr.rel (%p155) target = $region32
      $region31: #{tpu_custom_call.1} parent=5 // pred_region
        %s159 = ssub.s32 %s15, 1
        %s160 = sand.u32 %s28, 1
        %s161 = scalar_lea.sflag [#allocation3], %s160
        %s162 = sand.u32 %s28, 1
        %s163 = smul.addr %s162, 8
        %s164 = scalar_lea.vmem [#allocation2], %s163
        // Predicated region
        $region33: #{tpu_custom_call.1} parent=31 // pred_check
          %p165 = pneg %p41
        $region34: #{tpu_custom_call.1} parent=31 // pred_check_branch
          %167 = sbr.rel (%p165) target = $region36
        $region35: #{tpu_custom_call.1} parent=31 // pred_region
          %168 = dma.done %s161, 128
        $region36: #{tpu_custom_call.1} parent=31 // pred_fallthru
          _
        %s169 = sand.u32 %s28, 1
        %s170 = scalar_lea.sflag [#allocation3], %s169
        %s171 = sand.u32 %s28, 1
        %s172 = smul.addr %s171, 8
        %s173 = scalar_lea.vmem [#allocation2], %s172
        %p174 = pneg %p41
        %p175 = pneg %p38
        %p176 = pneg %p62
        %p177 = pneg %p59
        %p178 = pneg %p83
        %p179 = pneg %p80
        %p180 = pneg %p109
        %p181 = pneg %p106
        %s182 = sand.u32 %s96, 1
        %s183 = scalar_lea.sflag [#allocation4], %s182
        %s184 = sand.u32 %s96, 1
        %s185 = smul.addr %s184, 8
        %s186 = scalar_lea.vmem [#allocation5], %s185
        %v187 = vld [vmem:[%s164] sm:$0xff]
        %v189 = vcombine.high %v187, %v187
        %191 = vmatprep.subr.mxu0 0.0
        %192 = vmatpush1.msra.mxu0 1.0
        %193 = vmatprep.subr.mxu0 0.0
        %194 = vmatpush1.msra.mxu0 1.0
        %195 = vmatprep.subr.mxu0 0.0
        %196 = vmatpush1.msra.mxu0 1.0
        %197 = vmatprep.subr.mxu0 0.0
        %198 = vmatpush1.msra.mxu0 1.0
        %199 = vmatprep.subr.mxu0 0.0
        %200 = vmatpush1.msra.mxu0 1.0
        %201 = vmatprep.subr.mxu0 0.0
        %202 = vmatpush1.msra.mxu0 1.0
        %203 = vmatprep.subr.mxu0 0.0
        %204 = vmatpush1.msra.mxu0 1.0
        %205 = vmatprep.subr.mxu0 0.0
        %206 = vmatpush1.msra.mxu0 1.0
        %207 = vmatprep.subr.mxu0 0.0
        %208 = vmatpush1.msra.mxu0 1.0
        %209 = vmatprep.subr.mxu0 0.0
        %210 = vmatpush1.msra.mxu0 1.0
        %211 = vmatprep.subr.mxu0 0.0
        %212 = vmatpush1.msra.mxu0 1.0
        %213 = vmatprep.subr.mxu0 0.0
        %214 = vmatpush1.msra.mxu0 1.0
        %215 = vmatprep.subr.mxu0 0.0
        %216 = vmatpush1.msra.mxu0 1.0
        %217 = vmatprep.subr.mxu0 0.0
        %218 = vmatpush1.msra.mxu0 1.0
        %219 = vmatprep.subr.mxu0 0.0
        %220 = vmatpush1.msra.mxu0 1.0
        %221 = vmatprep.subr.mxu0 0.0
        %222 = vmatpush1.msra.mxu0 1.0
        %223 = vmatprep.subr.mxu0 0.0
        %224 = vmatpush2.msra.mxu0 1.0
        %225 = vmatprep.subr.mxu0 0.0
        %226 = vmatpush2.msra.mxu0 1.0
        %227 = vmatprep.subr.mxu0 0.0
        %228 = vmatpush2.msra.mxu0 1.0
        %229 = vmatprep.subr.mxu0 0.0
        %230 = vmatpush2.msra.mxu0 1.0
        %231 = vmatprep.subr.mxu0 0.0
        %232 = vmatpush2.msra.mxu0 1.0
        %233 = vmatprep.subr.mxu0 0.0
        %234 = vmatpush2.msra.mxu0 1.0
        %235 = vmatprep.subr.mxu0 0.0
        %236 = vmatpush2.msra.mxu0 1.0
        %237 = vmatprep.subr.mxu0 0.0
        %238 = vmatpush2.msra.mxu0 1.0
        %239 = vmatprep.subr.mxu0 0.0
        %240 = vmatpush2.msra.mxu0 1.0
        %241 = vmatprep.subr.mxu0 0.0
        %242 = vmatpush2.msra.mxu0 1.0
        %243 = vmatprep.subr.mxu0 0.0
        %244 = vmatpush2.msra.mxu0 1.0
        %245 = vmatprep.subr.mxu0 0.0
        %246 = vmatpush2.msra.mxu0 1.0
        %247 = vmatprep.subr.mxu0 0.0
        %248 = vmatpush2.msra.mxu0 1.0
        %249 = vmatprep.subr.mxu0 0.0
        %250 = vmatpush2.msra.mxu0 1.0
        %251 = vmatprep.subr.mxu0 0.0
        %252 = vmatpush2.msra.mxu0 1.0
        %253 = vmatprep.subr.mxu0 0.0
        %254 = vmatpush2.msra.mxu0 1.0
        %255 = vmatprep.mubr.f32.mxu0 %v189
        %256 = vmatmul.mubr.f32.gmra.mxu0 %v187
        %v257 = vpop.f32.mrf.mxu0
        %v258 = vadd.f32 0.0, %v257
        %v259 = vpop.f32.mrf.mxu0
        %260 = vdwg.mxu0
        %v261 = vmul.f32 %v258, 0.00390625
        %v262 = vld [vmem:[%s1] sm:$0xf]
        %v263 = vld [vmem:[%s2] sm:$0xf]
        %vm264 = vcmask 31744
        %v266 = vsel %vm264, %v262, 0
        %vm268 = vcmask 1043456
        %v270 = vsel %vm268, %v261, 0
        %272 = vmatprep.subr.mxu0 0.0
        %273 = vmatpush1.msra.mxu0 0.0
        %274 = vmatprep.subr.mxu0 0.0
        %275 = vmatpush1.msra.mxu0 0.0
        %276 = vmatprep.subr.mxu0 0.0
        %277 = vmatpush1.msra.mxu0 0.0
        %278 = vmatprep.subr.mxu0 0.0
        %279 = vmatpush1.msra.mxu0 0.0
        %280 = vmatprep.subr.mxu0 0.0
        %281 = vmatpush1.msra.mxu0 0.0
        %282 = vmatprep.subr.mxu0 0.0
        %283 = vmatpush1.msra.mxu0 0.0
        %284 = vmatprep.subr.mxu0 0.0
        %285 = vmatpush1.msra.mxu0 0.0
        %286 = vmatprep.subr.mxu0 0.0
        %287 = vmatpush1.msra.mxu0 0.0
        %288 = vmatprep.subr.mxu0 0.0
        %289 = vmatpush1.msra.mxu0 0.0
        %290 = vmatprep.subr.mxu0 0.0
        %291 = vmatpush1.msra.mxu0 0.0
        %292 = vmatprep.subr.mxu0 0.0
        %293 = vmatpush1.msra.mxu0 0.0
        %294 = vmatprep.subr.mxu0 0.0
        %295 = vmatpush1.msra.mxu0 0.0
        %296 = vmatprep.subr.mxu0 0.0
        %297 = vmatpush1.msra.mxu0 0.0
        %298 = vmatprep.subr.mxu0 0.0
        %299 = vmatpush1.msra.mxu0 0.0
        %300 = vmatprep.subr.mxu0 0.0
        %301 = vmatpush1.msra.mxu0 0.0
        %302 = vmatprep.subr.mxu0 0.0
        %303 = vmatpush1.msra.mxu0 %v270
        %304 = vmatprep.subr.mxu0 0.0
        %305 = vmatpush2.msra.mxu0 0.0
        %306 = vmatprep.subr.mxu0 0.0
        %307 = vmatpush2.msra.mxu0 0.0
        %308 = vmatprep.subr.mxu0 0.0
        %309 = vmatpush2.msra.mxu0 0.0
        %310 = vmatprep.subr.mxu0 0.0
        %311 = vmatpush2.msra.mxu0 0.0
        %312 = vmatprep.subr.mxu0 0.0
        %313 = vmatpush2.msra.mxu0 0.0
        %314 = vmatprep.subr.mxu0 0.0
        %315 = vmatpush2.msra.mxu0 0.0
        %316 = vmatprep.subr.mxu0 0.0
        %317 = vmatpush2.msra.mxu0 0.0
        %318 = vmatprep.subr.mxu0 0.0
        %319 = vmatpush2.msra.mxu0 0.0
        %320 = vmatprep.subr.mxu0 0.0
        %321 = vmatpush2.msra.mxu0 0.0
        %322 = vmatprep.subr.mxu0 0.0
        %323 = vmatpush2.msra.mxu0 0.0
        %324 = vmatprep.subr.mxu0 0.0
        %325 = vmatpush2.msra.mxu0 0.0
        %326 = vmatprep.subr.mxu0 0.0
        %327 = vmatpush2.msra.mxu0 0.0
        %328 = vmatprep.subr.mxu0 0.0
        %329 = vmatpush2.msra.mxu0 0.0
        %330 = vmatprep.subr.mxu0 0.0
        %331 = vmatpush2.msra.mxu0 0.0
        %332 = vmatprep.subr.mxu0 0.0
        %333 = vmatpush2.msra.mxu0 0.0
        %334 = vmatprep.subr.mxu0 0.0
        %335 = vmatpush2.msra.mxu0 0.0
        %336 = vmatprep.mubr.f32.mxu0 0.0
        %337 = vmatmul.mubr.f32.gmra.mxu0 %v266
        %v338 = vpop.f32.mrf.mxu0
        %v339 = vadd.f32 %v263, %v338
        %v340 = vpop.f32.mrf.mxu0
        %341 = vdwg.mxu0
        %v342 = vxor.u32 %v339, 2147483648
        %v343 = vmul.f32 %v342, 1.442695
        %v344 = vpow.pop %v343
        %v345 = vadd.f32 %v344, 1.0
        %v346 = vrcp.pop %v345
        %v347 = vmul.f32 1.0, %v346
        %349 = vset.pattern.permute.xlu0 0
        %350 = vperm.xlu0 %349, %v347
        %v351 = vpop.permute.xlu0 %350
        %v353 = vunpack.c.l.s4 839922192
        %v354 = vunpack.c.0.s8 %v353
        %v355 = vlaneseq
        %v356 = vshrl.u32 %v355, 7
        %v357 = vsub.s32 %v354, %v356
        %v358 = vrot.slane %v351, %v357
        %v360 = vmul.f32 %v187, %v358
        %361 = vst [vmem:[%s186] sm:$0xff] %v360
        %s362 = sand.u32 %s96, 1
        %s363 = scalar_lea.sflag [#allocation4], %s362
        %s364 = sand.u32 %s96, 1
        %s365 = smul.addr %s364, 8
        %s366 = scalar_lea.vmem [#allocation5], %s365
        // Predicated region
        $region37: #{tpu_custom_call.1} parent=31 // pred_check
          %p367 = pneg %p106
        $region38: #{tpu_custom_call.1} parent=31 // pred_check_branch
          %369 = sbr.rel (%p367) target = $region40
        $region39: #{tpu_custom_call.1} parent=31 // pred_region
          %s371 = ssub.s32 128, 128
          %372 = vsyncadd %s363, %s371
          %s373 = smul.addr %s20, 2
          %s374 = smul.addr %s373, 64
          %s375 = scalar_lea.hbm %s3, %s374
          %s377 = sshll.u32 %s366, 4
          %s378 = int_to_ptr.vmem [resolvable:$true] %s377
          %380 = dma.vmem_to_hbm [thread:$0]  %s378, 128, %s375, %s363
        $region40: #{tpu_custom_call.1} parent=31 // pred_fallthru
          _
      $region32: #{tpu_custom_call.1} parent=5 // pred_fallthru
        _
      %p381 = scmp.le.s32.totalorder 2, %s15
      // Predicated region
      $region41: #{tpu_custom_call.1} parent=5 // pred_check
        %p382 = pneg %p381
      $region42: #{tpu_custom_call.1} parent=5 // pred_check_branch
        %384 = sbr.rel (%p382) target = $region44
      $region43: #{tpu_custom_call.1} parent=5 // pred_region
        %s385 = ssub.s32 %s15, 2
        // Predicated region
        $region45: #{tpu_custom_call.1} parent=43 // pred_check
          %p386 = pneg %p112
        $region46: #{tpu_custom_call.1} parent=43 // pred_check_branch
          %388 = sbr.rel (%p386) target = $region48
        $region47: #{tpu_custom_call.1} parent=43 // pred_region
          %s389 = sand.u32 %s97, 1
          %s390 = scalar_lea.sflag [#allocation4], %s389
          %s391 = sand.u32 %s97, 1
          %s392 = smul.addr %s391, 8
          %s393 = scalar_lea.vmem [#allocation5], %s392
          %394 = dma.done %s390, 128
        $region48: #{tpu_custom_call.1} parent=43 // pred_fallthru
          _
      $region44: #{tpu_custom_call.1} parent=5 // pred_fallthru
        _
    $region6: #{tpu_custom_call.1} parent=1 // loop_footer
      %s19 = sadd.s32 1, %s15
    $region7: #{tpu_custom_call.1} parent=1 // loop_footer_branch
      %14 = sbr.rel target = $region3
    $region8: #{tpu_custom_call.1} parent=1 // loop_exit
      _
    %395 = vsyncpa [#allocation3], 1
    %s396 = scalar_lea.sflag [#allocation3], 1
    %397 = vsyncpa %s396, 1
    %398 = vsyncpa [#allocation4], 1
    %s399 = scalar_lea.sflag [#allocation4], 1
    %400 = vsyncpa %s399, 1

</llo_original>
